<compile_context>
chip_gen: v5e
topology: v5e:2x2
jax: 0.10.0
libtpu: 0.0.40
codegen_flags: <defaults>
</compile_context>

<pallas_src>
import functools
import math

import jax
import jax.numpy as jnp
from jax.experimental import pallas as pl
from jax.experimental.pallas import tpu as pltpu


# -----------------------------------------------------------------------------
# Kernels
# -----------------------------------------------------------------------------
def _pool_mlp_kernel(x_ref, w1_ref, b1_ref, w2_ref, b2_ref, scale_ref,
                     sum_sc, max_sc, *, inv_hw, use_avg, use_max):
    """Accumulate per-channel sum/max over spatial tiles; on the last tile run
    the shared MLP on the avg/max pools, sum the branches and write sigmoid."""
    s = pl.program_id(1)
    last = pl.num_programs(1) - 1

    x = x_ref[0]                                    # (C, T) native dtype
    xf = x.astype(jnp.float32)

    @pl.when(s == 0)
    def _():
        sum_sc[...] = jnp.zeros(sum_sc.shape, jnp.float32)
        max_sc[...] = jnp.full(max_sc.shape, -jnp.inf, dtype=jnp.float32)

    sum_sc[...] += jnp.sum(xf, axis=-1, keepdims=True)              # (C, 1)
    max_sc[...] = jnp.maximum(max_sc[...],
                              jnp.max(xf, axis=-1, keepdims=True))  # (C, 1)

    @pl.when(s == last)
    def _():
        w1 = w1_ref[...].astype(jnp.float32)        # (Ch, C)  torch (out, in)
        b1 = b1_ref[...].astype(jnp.float32)        # (Ch, 1)
        w2 = w2_ref[...].astype(jnp.float32)        # (C, Ch)
        b2 = b2_ref[...].astype(jnp.float32)        # (C, 1)

        def mlp(col):                               # col: (C, 1)
            h = jnp.maximum(
                jnp.dot(w1, col, preferred_element_type=jnp.float32) + b1, 0.0)
            return jnp.dot(w2, h, preferred_element_type=jnp.float32) + b2

        branches = []
        if use_avg:
            branches.append(mlp(sum_sc[...] * inv_hw))
        if use_max:
            branches.append(mlp(max_sc[...]))
        att = branches[0]
        for extra in branches[1:]:
            att = att + extra
        scale_ref[0] = jax.nn.sigmoid(att)          # (C, 1)


def _apply_scale_kernel(x_ref, scale_ref, o_ref):
    """out = x * sigmoid(channel_att_sum), broadcast over the spatial axis."""
    o_ref[...] = (x_ref[...].astype(jnp.float32) * scale_ref[...]).astype(o_ref.dtype)


# -----------------------------------------------------------------------------
# Wrapper
# -----------------------------------------------------------------------------
def _choose_hw_tile(hw, c, itemsize, budget_bytes=2 * 1024 * 1024):
    """Largest spatial (lane) tile that divides hw, is a multiple of 128 and
    fits the per-block VMEM budget; falls back to the full extent."""
    if hw % 128 != 0 or hw * c * itemsize <= budget_bytes:
        return hw
    best, t = 128, 128
    while t <= hw:
        if hw % t == 0 and c * t * itemsize <= budget_bytes:
            best = t
        t += 128
    return best


def channel_gate_forward(x, params, pool_types=("avg", "max")):
    """Pallas implementation of ChannelGate.forward.  x: (N, C, H, W) NCHW."""
    # TODO(synk): 'lp' and 'lse' pool types are not implemented (only the
    # module defaults 'avg'/'max' are supported).
    for p in pool_types:
        if p not in ("avg", "max"):
            raise NotImplementedError(f"pool_type {p!r} not supported")
    use_avg = "avg" in pool_types
    use_max = "max" in pool_types

    N, C, H, W = x.shape
    HW = H * W
    Ch = params["w1"].shape[0]

    x3 = x.reshape(N, C, HW)                 # free reshape, stays NCHW-contiguous
    T = _choose_hw_tile(HW, C, x.dtype.itemsize)
    grid = (N, HW // T)

    w1 = params["w1"]                        # (Ch, C)  torch layout (out, in)
    b1 = params["b1"].reshape(Ch, 1)
    w2 = params["w2"]                        # (C, Ch)
    b2 = params["b2"].reshape(C, 1)
    wbytes = sum(int(a.size) * a.dtype.itemsize for a in (w1, b1, w2, b2))

    pool_kernel = functools.partial(
        _pool_mlp_kernel, inv_hw=1.0 / HW, use_avg=use_avg, use_max=use_max)

    # Pass 1: per-channel avg/max pooling + MLP + sigmoid -> scale (N, C, 1) f32
    scale = pl.pallas_call(
        pool_kernel,
        out_shape=jax.ShapeDtypeStruct((N, C, 1), jnp.float32),
        grid_spec=pltpu.PrefetchScalarGridSpec(
            num_scalar_prefetch=0,
            grid=grid,
            in_specs=[
                pl.BlockSpec((1, C, T), lambda n, s: (n, 0, s)),
                pl.BlockSpec((Ch, C), lambda n, s: (0, 0)),
                pl.BlockSpec((Ch, 1), lambda n, s: (0, 0)),
                pl.BlockSpec((C, Ch), lambda n, s: (0, 0)),
                pl.BlockSpec((C, 1), lambda n, s: (0, 0)),
            ],
            out_specs=pl.BlockSpec((1, C, 1), lambda n, s: (n, 0, 0)),
            scratch_shapes=[pltpu.VMEM((C, 1), jnp.float32),
                            pltpu.VMEM((C, 1), jnp.float32)],
        ),
        compiler_params=pltpu.CompilerParams(
            dimension_semantics=("parallel", "arbitrary"),
            vmem_limit_bytes=32 * 1024 * 1024),
        cost_estimate=pl.CostEstimate(
            flops=int(2 * N * C * HW + 4 * N * C * Ch),
            transcendentals=int(N * C),
            bytes_accessed=int(x3.size * x3.dtype.itemsize + wbytes + N * C * 4)),
    )(x3, w1, b1, w2, b2)

    # Pass 2: out = x * scale (broadcast over spatial), lane-dense tiles.
    out3 = pl.pallas_call(
        _apply_scale_kernel,
        out_shape=jax.ShapeDtypeStruct((N, C, HW), x.dtype),
        grid_spec=pltpu.PrefetchScalarGridSpec(
            num_scalar_prefetch=0,
            grid=grid,
            in_specs=[
                pl.BlockSpec((1, C, T), lambda n, s: (n, 0, s)),
                pl.BlockSpec((1, C, 1), lambda n, s: (n, 0, 0)),
            ],
            out_specs=pl.BlockSpec((1, C, T), lambda n, s: (n, 0, s)),
        ),
        compiler_params=pltpu.CompilerParams(
            dimension_semantics=("parallel", "parallel"),
            vmem_limit_bytes=32 * 1024 * 1024),
        cost_estimate=pl.CostEstimate(
            flops=int(N * C * HW),
            transcendentals=0,
            bytes_accessed=int(2 * x3.size * x3.dtype.itemsize + N * C * 4)),
    )(x3, scale)

    return out3.reshape(N, C, H, W)


# -----------------------------------------------------------------------------
# Pure-JAX reference (matches the PyTorch module)
# -----------------------------------------------------------------------------
def reference_forward(x, params, pool_types=("avg", "max")):
    xf = x.astype(jnp.float32)
    N, C, H, W = x.shape
    flat = xf.reshape(N, C, H * W)

    def mlp(v):                                      # v: (N, C)
        h = jnp.maximum(v @ params["w1"].T + params["b1"], 0.0)
        return h @ params["w2"].T + params["b2"]

    att = jnp.zeros((N, C), jnp.float32)
    if "avg" in pool_types:
        att = att + mlp(flat.mean(axis=-1))
    if "max" in pool_types:
        att = att + mlp(flat.max(axis=-1))
    scale = jax.nn.sigmoid(att)[:, :, None, None]
    return (xf * scale).astype(x.dtype)


# -----------------------------------------------------------------------------
if __name__ == "__main__":
    N, C, H, W = 2, 64, 16, 16          # gate_channels=64
    reduction_ratio = 16                # module default -> hidden = 4
    Ch = C // reduction_ratio

    key = jax.random.PRNGKey(0)
    k1, k2, k3, k4, kx = jax.random.split(key, 5)
    params = {
        "w1": jax.random.normal(k1, (Ch, C), jnp.float32) / math.sqrt(C),
        "b1": jax.random.normal(k2, (Ch,), jnp.float32) * 0.1,
        "w2": jax.random.normal(k3, (C, Ch), jnp.float32) / math.sqrt(Ch),
        "b2": jax.random.normal(k4, (C,), jnp.float32) * 0.1,
    }
    x = jax.random.normal(kx, (N, C, H, W), jnp.float32)   # NCHW like PyTorch

    out = channel_gate_forward(x, params)
    out = jax.block_until_ready(out)

    ref = reference_forward(x, params)
    assert out.shape == (N, C, H, W), out.shape
    max_err = float(jnp.max(jnp.abs(out - ref)))
    assert jnp.allclose(out, ref, atol=1e-4, rtol=1e-4), max_err

    print("KERNEL_OK")
</pallas_src>

<mosaic_0001>
module attributes {stable_mosaic.version = 11 : i64} {
  func.func @_pool_mlp_kernel(%arg0: i32, %arg1: i32, %arg2: memref<1x64x256xf32, #tpu.memory_space<vmem>>, %arg3: memref<4x64xf32, #tpu.memory_space<vmem>>, %arg4: memref<4x1xf32, #tpu.memory_space<vmem>>, %arg5: memref<64x4xf32, #tpu.memory_space<vmem>>, %arg6: memref<64x1xf32, #tpu.memory_space<vmem>>, %arg7: memref<1x64x1xf32, #tpu.memory_space<vmem>>, %arg8: memref<64x1xf32, #tpu.memory_space<vmem>>, %arg9: memref<64x1xf32, #tpu.memory_space<vmem>>) attributes {dimension_semantics = [#tpu.dimension_semantics<parallel>, #tpu.dimension_semantics<arbitrary>], iteration_bounds = array<i64: 2, 1>, scalar_prefetch = 0 : i64, scratch_operands = 2 : i64, tpu.core_type = #tpu.core_type<tc>, window_params = [{transform_indices = @transform_0, window_bounds = array<i64: 1, 64, 256>}, {pipeline_mode = #tpu.pipeline_mode<synchronous>, transform_indices = @transform_1, window_bounds = array<i64: 4, 64>}, {pipeline_mode = #tpu.pipeline_mode<synchronous>, transform_indices = @transform_2, window_bounds = array<i64: 4, 1>}, {pipeline_mode = #tpu.pipeline_mode<synchronous>, transform_indices = @transform_3, window_bounds = array<i64: 64, 4>}, {pipeline_mode = #tpu.pipeline_mode<synchronous>, transform_indices = @transform_4, window_bounds = array<i64: 64, 1>}, {transform_indices = @transform_5, window_bounds = array<i64: 1, 64, 1>}]} {
    %c0 = arith.constant 0 : index
    %c0_0 = arith.constant 0 : index
    %c0_1 = arith.constant 0 : index
    %0 = vector.load %arg2[%c0, %c0_0, %c0_1] : memref<1x64x256xf32, #tpu.memory_space<vmem>>, vector<1x64x256xf32>
    %1 = vector.shape_cast %0 : vector<1x64x256xf32> to vector<64x256xf32>
    %c0_i32 = arith.constant 0 : i32
    %2 = arith.cmpi eq, %arg1, %c0_i32 : i32
    %3 = arith.extui %2 : i1 to i32
    %c0_i32_2 = arith.constant 0 : i32
    %4 = arith.cmpi ne, %3, %c0_i32_2 : i32
    scf.if %4 {
      %cst_14 = arith.constant 0.000000e+00 : f32
      %18 = vector.broadcast %cst_14 : f32 to vector<64x1xf32>
      %c0_15 = arith.constant 0 : index
      %c0_16 = arith.constant 0 : index
      %19 = vector.load %arg8[%c0_15, %c0_16] : memref<64x1xf32, #tpu.memory_space<vmem>>, vector<64x1xf32>
      tpu.vector_store %arg8[%c0_15, %c0_16], %18 {strides = array<i32>} : memref<64x1xf32, #tpu.memory_space<vmem>>, vector<64x1xf32>,
      %cst_17 = arith.constant 0xFF800000 : f32
      %20 = vector.broadcast %cst_17 : f32 to vector<64x1xf32>
      %c0_18 = arith.constant 0 : index
      %c0_19 = arith.constant 0 : index
      %21 = vector.load %arg9[%c0_18, %c0_19] : memref<64x1xf32, #tpu.memory_space<vmem>>, vector<64x1xf32>
      tpu.vector_store %arg9[%c0_18, %c0_19], %20 {strides = array<i32>} : memref<64x1xf32, #tpu.memory_space<vmem>>, vector<64x1xf32>,
    } else {
    }
    %c0_3 = arith.constant 0 : index
    %c0_4 = arith.constant 0 : index
    %5 = vector.load %arg8[%c0_3, %c0_4] : memref<64x1xf32, #tpu.memory_space<vmem>>, vector<64x1xf32>
    %cst = arith.constant dense<0.000000e+00> : vector<64xf32>
    %6 = vector.multi_reduction <add>, %1, %cst [1] : vector<64x256xf32> to vector<64xf32>
    %7 = vector.shape_cast %6 : vector<64xf32> to vector<64x1xf32>
    %8 = arith.addf %5, %7 : vector<64x1xf32>
    %c0_5 = arith.constant 0 : index
    %c0_6 = arith.constant 0 : index
    %9 = vector.load %arg8[%c0_5, %c0_6] : memref<64x1xf32, #tpu.memory_space<vmem>>, vector<64x1xf32>
    tpu.vector_store %arg8[%c0_5, %c0_6], %8 {strides = array<i32>} : memref<64x1xf32, #tpu.memory_space<vmem>>, vector<64x1xf32>,
    %c0_7 = arith.constant 0 : index
    %c0_8 = arith.constant 0 : index
    %10 = vector.load %arg9[%c0_7, %c0_8] : memref<64x1xf32, #tpu.memory_space<vmem>>, vector<64x1xf32>
    %cst_9 = arith.constant dense<0xFF800000> : vector<64xf32>
    %11 = vector.multi_reduction <maximumf>, %1, %cst_9 [1] : vector<64x256xf32> to vector<64xf32>
    %12 = vector.shape_cast %11 : vector<64xf32> to vector<64x1xf32>
    %13 = arith.maximumf %10, %12 : vector<64x1xf32>
    %c0_10 = arith.constant 0 : index
    %c0_11 = arith.constant 0 : index
    %14 = vector.load %arg9[%c0_10, %c0_11] : memref<64x1xf32, #tpu.memory_space<vmem>>, vector<64x1xf32>
    tpu.vector_store %arg9[%c0_10, %c0_11], %13 {strides = array<i32>} : memref<64x1xf32, #tpu.memory_space<vmem>>, vector<64x1xf32>,
    %c0_i32_12 = arith.constant 0 : i32
    %15 = arith.cmpi eq, %arg1, %c0_i32_12 : i32
    %16 = arith.extui %15 : i1 to i32
    %c0_i32_13 = arith.constant 0 : i32
    %17 = arith.cmpi ne, %16, %c0_i32_13 : i32
    scf.if %17 {
      %c0_14 = arith.constant 0 : index
      %c0_15 = arith.constant 0 : index
      %18 = vector.load %arg3[%c0_14, %c0_15] : memref<4x64xf32, #tpu.memory_space<vmem>>, vector<4x64xf32>
      %c0_16 = arith.constant 0 : index
      %c0_17 = arith.constant 0 : index
      %19 = vector.load %arg4[%c0_16, %c0_17] : memref<4x1xf32, #tpu.memory_space<vmem>>, vector<4x1xf32>
      %c0_18 = arith.constant 0 : index
      %c0_19 = arith.constant 0 : index
      %20 = vector.load %arg5[%c0_18, %c0_19] : memref<64x4xf32, #tpu.memory_space<vmem>>, vector<64x4xf32>
      %c0_20 = arith.constant 0 : index
      %c0_21 = arith.constant 0 : index
      %21 = vector.load %arg6[%c0_20, %c0_21] : memref<64x1xf32, #tpu.memory_space<vmem>>, vector<64x1xf32>
      %c0_22 = arith.constant 0 : index
      %c0_23 = arith.constant 0 : index
      %22 = vector.load %arg8[%c0_22, %c0_23] : memref<64x1xf32, #tpu.memory_space<vmem>>, vector<64x1xf32>
      %cst_24 = arith.constant 3.906250e-03 : f32
      %23 = vector.broadcast %cst_24 : f32 to vector<64x1xf32>
      %24 = arith.mulf %22, %23 : vector<64x1xf32>
      %cst_25 = arith.constant dense<0.000000e+00> : vector<4x1xf32>
      %25 = tpu.matmul %18, %24, %cst_25 {dimension_numbers = #tpu.dot_dimension_numbers<[1], [0], [0], [1], [0, 0, 1, 1], [], []>} : vector<4x64xf32>, vector<64x1xf32>, vector<4x1xf32> -> vector<4x1xf32>
      %26 = arith.addf %25, %19 : vector<4x1xf32>
      %cst_26 = arith.constant 0.000000e+00 : f32
      %27 = vector.broadcast %cst_26 : f32 to vector<4x1xf32>
      %28 = arith.maximumf %26, %27 : vector<4x1xf32>
      %cst_27 = arith.constant dense<0.000000e+00> : vector<64x1xf32>
      %29 = tpu.matmul %20, %28, %cst_27 {dimension_numbers = #tpu.dot_dimension_numbers<[1], [0], [0], [1], [0, 0, 1, 1], [], []>} : vector<64x4xf32>, vector<4x1xf32>, vector<64x1xf32> -> vector<64x1xf32>
      %30 = arith.addf %29, %21 : vector<64x1xf32>
      %c0_28 = arith.constant 0 : index
      %c0_29 = arith.constant 0 : index
      %31 = vector.load %arg9[%c0_28, %c0_29] : memref<64x1xf32, #tpu.memory_space<vmem>>, vector<64x1xf32>
      %cst_30 = arith.constant dense<0.000000e+00> : vector<4x1xf32>
      %32 = tpu.matmul %18, %31, %cst_30 {dimension_numbers = #tpu.dot_dimension_numbers<[1], [0], [0], [1], [0, 0, 1, 1], [], []>} : vector<4x64xf32>, vector<64x1xf32>, vector<4x1xf32> -> vector<4x1xf32>
      %33 = arith.addf %32, %19 : vector<4x1xf32>
      %cst_31 = arith.constant 0.000000e+00 : f32
      %34 = vector.broadcast %cst_31 : f32 to vector<4x1xf32>
      %35 = arith.maximumf %33, %34 : vector<4x1xf32>
      %cst_32 = arith.constant dense<0.000000e+00> : vector<64x1xf32>
      %36 = tpu.matmul %20, %35, %cst_32 {dimension_numbers = #tpu.dot_dimension_numbers<[1], [0], [0], [1], [0, 0, 1, 1], [], []>} : vector<64x4xf32>, vector<4x1xf32>, vector<64x1xf32> -> vector<64x1xf32>
      %37 = arith.addf %36, %21 : vector<64x1xf32>
      %38 = arith.addf %30, %37 : vector<64x1xf32>
      %39 = arith.negf %38 : vector<64x1xf32>
      %40 = math.exp %39 : vector<64x1xf32>
      %cst_33 = arith.constant 1.000000e+00 : f32
      %41 = vector.broadcast %cst_33 : f32 to vector<64x1xf32>
      %42 = arith.addf %41, %40 : vector<64x1xf32>
      %43 = arith.divf %41, %42 : vector<64x1xf32>
      %c0_34 = arith.constant 0 : index
      %c0_35 = arith.constant 0 : index
      %c0_36 = arith.constant 0 : index
      %44 = vector.load %arg7[%c0_34, %c0_35, %c0_36] : memref<1x64x1xf32, #tpu.memory_space<vmem>>, vector<1x64x1xf32>
      %45 = vector.shape_cast %44 : vector<1x64x1xf32> to vector<64x1xf32>
      %46 = vector.shape_cast %43 : vector<64x1xf32> to vector<1x64x1xf32>
      tpu.vector_store %arg7[%c0_34, %c0_35, %c0_36], %46 {strides = array<i32>} : memref<1x64x1xf32, #tpu.memory_space<vmem>>, vector<1x64x1xf32>,
    } else {
    }
    return
  }
  func.func @transform_0(%arg0: i32, %arg1: i32) -> (i32, i32, i32) {
    %c0_i32 = arith.constant 0 : i32
    %c0_i32_0 = arith.constant 0 : i32
    return %arg0, %c0_i32, %arg1 : i32, i32, i32
  }
  func.func @transform_1(%arg0: i32, %arg1: i32) -> (i32, i32) {
    %c0_i32 = arith.constant 0 : i32
    %c0_i32_0 = arith.constant 0 : i32
    %c0_i32_1 = arith.constant 0 : i32
    return %c0_i32, %c0_i32_0 : i32, i32
  }
  func.func @transform_2(%arg0: i32, %arg1: i32) -> (i32, i32) {
    %c0_i32 = arith.constant 0 : i32
    %c0_i32_0 = arith.constant 0 : i32
    %c0_i32_1 = arith.constant 0 : i32
    return %c0_i32, %c0_i32_0 : i32, i32
  }
  func.func @transform_3(%arg0: i32, %arg1: i32) -> (i32, i32) {
    %c0_i32 = arith.constant 0 : i32
    %c0_i32_0 = arith.constant 0 : i32
    %c0_i32_1 = arith.constant 0 : i32
    return %c0_i32, %c0_i32_0 : i32, i32
  }
  func.func @transform_4(%arg0: i32, %arg1: i32) -> (i32, i32) {
    %c0_i32 = arith.constant 0 : i32
    %c0_i32_0 = arith.constant 0 : i32
    %c0_i32_1 = arith.constant 0 : i32
    return %c0_i32, %c0_i32_0 : i32, i32
  }
  func.func @transform_5(%arg0: i32, %arg1: i32) -> (i32, i32, i32) {
    %c0_i32 = arith.constant 0 : i32
    %c0_i32_0 = arith.constant 0 : i32
    %c0_i32_1 = arith.constant 0 : i32
    return %arg0, %c0_i32, %c0_i32_0 : i32, i32, i32
  }
}

</mosaic_0001>

<llo_original>
// kernel: tpu_custom_call.1
$region0: #{tpu_custom_call.1}
  #allocation0 [shape = 'u32[]', space=smem, size = 0x4, offset = 0x4, fixed_abs, tag = 'smem constant byte address 0x4 - core index']
  #allocation1 [shape = 'u32[72,128]{1,0:T(1,128)}', space=vmem, size = 0x9000, scoped, tag = 'internal scratch']
  #allocation2 [shape = 'f32[64,1]{1,0:T(8,128)}', space=vmem, size = 0x8000, scoped, tag = 'scratch operand']
  #allocation3 [shape = 'f32[64,1]{1,0:T(8,128)}', space=vmem, size = 0x8000, scoped, tag = 'scratch operand']
  %s0 = inlined_call_operand.hbm [shape: f32[2,64,256], index: 0, kind: input, shape index: {}]
  %s1 = inlined_call_operand.vmem [shape: f32[4,64], index: 1, kind: input, shape index: {}]
  %s2 = inlined_call_operand.vmem [shape: f32[4,1], index: 2, kind: input, shape index: {}]
  %s3 = inlined_call_operand.vmem [shape: f32[64,4], index: 3, kind: input, shape index: {}]
  %s4 = inlined_call_operand.vmem [shape: f32[64,1], index: 4, kind: input, shape index: {}]
  %s5 = inlined_call_operand.vmem [shape: f32[2,64,1], index: 5, kind: output, shape index: {}]
  %s6 = sld [smem:[#allocation0]]
  $region65: #{tpu_custom_call.1} parent=0
    _
  %s8 = ssub.s32 1, %s6
  %s9 = scalar_select 0, %s8, %s6
  $region1: #{tpu_custom_call.1} parent=0
    #allocation4 [shape = 'u8[131072]{0}', space=vmem, size = 0x20000, scoped, tag = 'input window, operand 0']
    #allocation5 [shape = 's32[2]{0}', space=sflag, size = 0x8, scoped, tag = 'scoped memory for tpu_custom_call.1']
    %10 = vsyncpa [#allocation5], 0
    %s11 = scalar_lea.sflag [#allocation5], 1
    %12 = vsyncpa %s11, 0
    loop: start=0, step=1, limit=4
    $region2: #{tpu_custom_call.1} parent=1 // loop_pre_header
      _
    $region3: #{tpu_custom_call.1} parent=1 // loop_header
      %s14 = sphi 0, %s18
      %p15 = scmp.ge.s32.totalorder %s14, 4
      %s21 = sphi 0, %s33
      %s22 = sphi 0, %s29
      %s23 = sphi 0, %s21
      %s24 = sphi 0, %s22
      %s25 = sphi 0, %s23
      %s26 = sphi 0, %s24
      %s38 = sphi 0, %s40
      %s41 = sphi 0, %s38
      %s42 = sphi 0, %s41
      %s58 = sphi 0, %s42
      %s62 = sphi 0, %s62
      %s64 = sphi 0, %s62
      %s65 = sphi 0, %s64
      %s79 = sphi 0, %s65
      %s83 = sphi 0, %s83
      %s85 = sphi 0, %s83
      %s86 = sphi 0, %s85
      %s100 = sphi 0, %s86
      %s104 = sphi 0, %s104
      %s106 = sphi 0, %s104
      %s107 = sphi 0, %s106
      %s121 = sphi 0, %s107
      %s125 = sphi 0, %s125
      %s127 = sphi 0, %s125
      %s128 = sphi 0, %s127
      %s142 = sphi 0, %s128
      %s148 = sphi 0, %s150
      %s151 = sphi 0, %s148
      %s152 = sphi 0, %s151
      %s168 = sphi 0, %s152
    $region4: #{tpu_custom_call.1} parent=1 // loop_header_branch
      %17 = sbr.rel (%p15) target = $region8
    $region5: #{tpu_custom_call.1} parent=1 // loop_body
      %s19 = ssub.s32 %s14, 1
      %s20 = ssub.s32 %s14, 2
      %s27 = sadd.s32 1, %s22
      %p28 = scmp.ge.s32.totalorder %s27, 1
      %s29 = scalar_select %p28, 0, %s27
      %s30 = sadd.s32 1, %s21
      %s31 = scalar_select %p28, %s30, %s21
      %p32 = scmp.ge.s32.totalorder %s31, 2
      %s33 = scalar_select %p32, 0, %s31
      %s34 = ssub.s32 %s21, %s33
      %s35 = ssub.s32 %s22, %s29
      %s36 = sor.u32 %s34, %s35
      %p37 = scmp.eq.s32.totalorder %s36, 0
      %s39 = sadd.s32 %s38, 1
      %s40 = scalar_select %p37, %s38, %s39
      %p43 = pneg %p37
      %p44 = scmp.eq.s32.totalorder %s14, 1
      %p45 = por %p43, %p44
      %p46 = scmp.ne.s32.totalorder %s38, %s41
      %p47 = scmp.eq.s32.totalorder %s14, 0
      %p48 = por %p46, %p47
      %p49 = scmp.ne.s32.totalorder %s38, %s41
      %p50 = scmp.eq.s32.totalorder %s19, 1
      %p51 = por %p49, %p50
      %p52 = scmp.ne.s32.totalorder %s41, %s42
      %p53 = scmp.eq.s32.totalorder %s19, 0
      %p54 = por %p52, %p53
      %p55 = scmp.ne.s32.totalorder %s41, %s42
      %p56 = scmp.eq.s32.totalorder %s20, 1
      %p57 = por %p55, %p56
      %p59 = scmp.ne.s32.totalorder %s42, %s58
      %p60 = scmp.eq.s32.totalorder %s20, 0
      %p61 = por %p59, %p60
      %s63 = sadd.s32 %s62, 1
      %p66 = scmp.eq.s32.totalorder %s14, 1
      %p67 = scmp.ne.s32.totalorder %s62, %s64
      %p68 = scmp.eq.s32.totalorder %s14, 0
      %p69 = por %p67, %p68
      %p70 = scmp.ne.s32.totalorder %s62, %s64
      %p71 = scmp.eq.s32.totalorder %s19, 1
      %p72 = por %p70, %p71
      %p73 = scmp.ne.s32.totalorder %s64, %s65
      %p74 = scmp.eq.s32.totalorder %s19, 0
      %p75 = por %p73, %p74
      %p76 = scmp.ne.s32.totalorder %s64, %s65
      %p77 = scmp.eq.s32.totalorder %s20, 1
      %p78 = por %p76, %p77
      %p80 = scmp.ne.s32.totalorder %s65, %s79
      %p81 = scmp.eq.s32.totalorder %s20, 0
      %p82 = por %p80, %p81
      %s84 = sadd.s32 %s83, 1
      %p87 = scmp.eq.s32.totalorder %s14, 1
      %p88 = scmp.ne.s32.totalorder %s83, %s85
      %p89 = scmp.eq.s32.totalorder %s14, 0
      %p90 = por %p88, %p89
      %p91 = scmp.ne.s32.totalorder %s83, %s85
      %p92 = scmp.eq.s32.totalorder %s19, 1
      %p93 = por %p91, %p92
      %p94 = scmp.ne.s32.totalorder %s85, %s86
      %p95 = scmp.eq.s32.totalorder %s19, 0
      %p96 = por %p94, %p95
      %p97 = scmp.ne.s32.totalorder %s85, %s86
      %p98 = scmp.eq.s32.totalorder %s20, 1
      %p99 = por %p97, %p98
      %p101 = scmp.ne.s32.totalorder %s86, %s100
      %p102 = scmp.eq.s32.totalorder %s20, 0
      %p103 = por %p101, %p102
      %s105 = sadd.s32 %s104, 1
      %p108 = scmp.eq.s32.totalorder %s14, 1
      %p109 = scmp.ne.s32.totalorder %s104, %s106
      %p110 = scmp.eq.s32.totalorder %s14, 0
      %p111 = por %p109, %p110
      %p112 = scmp.ne.s32.totalorder %s104, %s106
      %p113 = scmp.eq.s32.totalorder %s19, 1
      %p114 = por %p112, %p113
      %p115 = scmp.ne.s32.totalorder %s106, %s107
      %p116 = scmp.eq.s32.totalorder %s19, 0
      %p117 = por %p115, %p116
      %p118 = scmp.ne.s32.totalorder %s106, %s107
      %p119 = scmp.eq.s32.totalorder %s20, 1
      %p120 = por %p118, %p119
      %p122 = scmp.ne.s32.totalorder %s107, %s121
      %p123 = scmp.eq.s32.totalorder %s20, 0
      %p124 = por %p122, %p123
      %s126 = sadd.s32 %s125, 1
      %p129 = scmp.eq.s32.totalorder %s14, 1
      %p130 = scmp.ne.s32.totalorder %s125, %s127
      %p131 = scmp.eq.s32.totalorder %s14, 0
      %p132 = por %p130, %p131
      %p133 = scmp.ne.s32.totalorder %s125, %s127
      %p134 = scmp.eq.s32.totalorder %s19, 1
      %p135 = por %p133, %p134
      %p136 = scmp.ne.s32.totalorder %s127, %s128
      %p137 = scmp.eq.s32.totalorder %s19, 0
      %p138 = por %p136, %p137
      %p139 = scmp.ne.s32.totalorder %s127, %s128
      %p140 = scmp.eq.s32.totalorder %s20, 1
      %p141 = por %p139, %p140
      %p143 = scmp.ne.s32.totalorder %s128, %s142
      %p144 = scmp.eq.s32.totalorder %s20, 0
      %p145 = por %p143, %p144
      %s146 = ssub.s32 %s21, %s33
      %p147 = scmp.eq.s32.totalorder %s146, 0
      %s149 = sadd.s32 %s148, 1
      %s150 = scalar_select %p147, %s148, %s149
      %p153 = pneg %p147
      %p154 = scmp.eq.s32.totalorder %s14, 1
      %p155 = por %p153, %p154
      %p156 = scmp.ne.s32.totalorder %s148, %s151
      %p157 = scmp.eq.s32.totalorder %s14, 0
      %p158 = por %p156, %p157
      %p159 = scmp.ne.s32.totalorder %s148, %s151
      %p160 = scmp.eq.s32.totalorder %s19, 1
      %p161 = por %p159, %p160
      %p162 = scmp.ne.s32.totalorder %s151, %s152
      %p163 = scmp.eq.s32.totalorder %s19, 0
      %p164 = por %p162, %p163
      %p165 = scmp.ne.s32.totalorder %s151, %s152
      %p166 = scmp.eq.s32.totalorder %s20, 1
      %p167 = por %p165, %p166
      %p169 = scmp.ne.s32.totalorder %s152, %s168
      %p170 = scmp.eq.s32.totalorder %s20, 0
      %p171 = por %p169, %p170
      %p172 = scmp.le.s32.totalorder 1, %s14
      %p173 = scmp.lt.s32.totalorder %s14, 3
      %p174 = pnand %p172, %p173
      %p175 = pneg %p174
      // Predicated region
      $region9: #{tpu_custom_call.1} parent=5 // pred_check
        _
      $region10: #{tpu_custom_call.1} parent=5 // pred_check_branch
        %177 = sbr.rel (%p174) target = $region12
      $region11: #{tpu_custom_call.1} parent=5 // pred_region
        %s178 = ssub.s32 %s14, 1
        // Predicated region
        $region13: #{tpu_custom_call.1} parent=11 // pred_check
          %p179 = pneg %p75
        $region14: #{tpu_custom_call.1} parent=11 // pred_check_branch
          %181 = sbr.rel (%p179) target = $region16
        $region15: #{tpu_custom_call.1} parent=11 // pred_region
          _
        $region16: #{tpu_custom_call.1} parent=11 // pred_fallthru
          _
        // Predicated region
        $region17: #{tpu_custom_call.1} parent=11 // pred_check
          %p182 = pneg %p96
        $region18: #{tpu_custom_call.1} parent=11 // pred_check_branch
          %184 = sbr.rel (%p182) target = $region20
        $region19: #{tpu_custom_call.1} parent=11 // pred_region
          _
        $region20: #{tpu_custom_call.1} parent=11 // pred_fallthru
          _
        // Predicated region
        $region21: #{tpu_custom_call.1} parent=11 // pred_check
          %p185 = pneg %p117
        $region22: #{tpu_custom_call.1} parent=11 // pred_check_branch
          %187 = sbr.rel (%p185) target = $region24
        $region23: #{tpu_custom_call.1} parent=11 // pred_region
          _
        $region24: #{tpu_custom_call.1} parent=11 // pred_fallthru
          _
        // Predicated region
        $region25: #{tpu_custom_call.1} parent=11 // pred_check
          %p188 = pneg %p138
        $region26: #{tpu_custom_call.1} parent=11 // pred_check_branch
          %190 = sbr.rel (%p188) target = $region28
        $region27: #{tpu_custom_call.1} parent=11 // pred_region
          _
        $region28: #{tpu_custom_call.1} parent=11 // pred_fallthru
          _
      $region12: #{tpu_custom_call.1} parent=5 // pred_fallthru
        _
      %p191 = scmp.lt.s32.totalorder %s14, 2
      // Predicated region
      $region29: #{tpu_custom_call.1} parent=5 // pred_check
        %p192 = pneg %p191
      $region30: #{tpu_custom_call.1} parent=5 // pred_check_branch
        %194 = sbr.rel (%p192) target = $region32
      $region31: #{tpu_custom_call.1} parent=5 // pred_region
        // Predicated region
        $region33: #{tpu_custom_call.1} parent=31 // pred_check
          %p195 = pneg %p48
        $region34: #{tpu_custom_call.1} parent=31 // pred_check_branch
          %197 = sbr.rel (%p195) target = $region36
        $region35: #{tpu_custom_call.1} parent=31 // pred_region
          %s198 = sand.u32 %s38, 1
          %s199 = scalar_lea.sflag [#allocation5], %s198
          %s200 = sand.u32 %s38, 1
          %s201 = smul.addr %s200, 128
          %s202 = scalar_lea.vmem [#allocation4], %s201
          %s203 = smul.u32 2, %s22
          %205 = vsyncadd %s199, 0
          %s206 = smul.addr %s21, 16
          %s207 = sadd.s32 %s203, %s206
          %s208 = smul.addr %s207, 8
          %s209 = scalar_lea.hbm %s0, %s208
          %s210 = sshll.u32 %s209, 4
          %s211 = int_to_ptr.hbm [resolvable:$true] %s210
          %s212 = sshll.u32 %s202, 4
          %s213 = int_to_ptr.vmem [resolvable:$true] %s212
          %218 = dma.hbm_to_vmem [thread:$0]  %s211, 2048, %s213, %s199, 256, 256, 16
        $region36: #{tpu_custom_call.1} parent=31 // pred_fallthru
          _
      $region32: #{tpu_custom_call.1} parent=5 // pred_fallthru
        _
      %p219 = scmp.le.s32.totalorder 1, %s14
      %p220 = scmp.lt.s32.totalorder %s14, 3
      %p221 = pnand %p219, %p220
      %p222 = pneg %p221
      // Predicated region
      $region37: #{tpu_custom_call.1} parent=5 // pred_check
        _
      $region38: #{tpu_custom_call.1} parent=5 // pred_check_branch
        %224 = sbr.rel (%p221) target = $region40
      $region39: #{tpu_custom_call.1} parent=5 // pred_region
        %s225 = ssub.s32 %s14, 1
        %s226 = sand.u32 %s41, 1
        %s227 = scalar_lea.sflag [#allocation5], %s226
        %s228 = sand.u32 %s41, 1
        %s229 = smul.addr %s228, 128
        %s230 = scalar_lea.vmem [#allocation4], %s229
        // Predicated region
        $region41: #{tpu_custom_call.1} parent=39 // pred_check
          %p231 = pneg %p54
        $region42: #{tpu_custom_call.1} parent=39 // pred_check_branch
          %233 = sbr.rel (%p231) target = $region44
        $region43: #{tpu_custom_call.1} parent=39 // pred_region
          %235 = dma.done %s227, 2048
        $region44: #{tpu_custom_call.1} parent=39 // pred_fallthru
          _
        %s236 = sand.u32 %s41, 1
        %s237 = scalar_lea.sflag [#allocation5], %s236
        %s238 = sand.u32 %s41, 1
        %s239 = smul.addr %s238, 128
        %s240 = scalar_lea.vmem [#allocation4], %s239
        %p241 = pneg %p54
        %p242 = pneg %p51
        %p243 = pneg %p75
        %p244 = pneg %p72
        %p245 = pneg %p96
        %p246 = pneg %p93
        %p247 = pneg %p117
        %p248 = pneg %p114
        %p249 = pneg %p138
        %p250 = pneg %p135
        %p251 = pneg %p164
        %p252 = pneg %p161
        %p253 = scmp.lt.s32.totalorder %s23, 1
        %s254 = scalar_select %p253, %s23, 1
        %s255 = smul.addr %s254, 8
        %s256 = smul.addr %s255, 8
        %s257 = scalar_lea.vmem %s5, %s256
        %s258 = smul.u32 2, %s24
        %p259 = scmp.lt.s32.totalorder %s23, 1
        %s260 = scalar_select %p259, %s23, 1
        %s261 = smul.addr %s260, 8
        %s262 = smul.addr %s261, 8
        %s263 = scalar_lea.vmem %s5, %s262
        %v264 = vld [vmem:[%s230] sm:$0xff]
        %v265 = vld [vmem:[%s230 + $0x8] sm:$0xff]
        %v266 = vld [vmem:[%s230 + $0x10] sm:$0xff]
        %v267 = vld [vmem:[%s230 + $0x18] sm:$0xff]
        %v268 = vld [vmem:[%s230 + $0x20] sm:$0xff]
        %v269 = vld [vmem:[%s230 + $0x28] sm:$0xff]
        %v270 = vld [vmem:[%s230 + $0x30] sm:$0xff]
        %v271 = vld [vmem:[%s230 + $0x38] sm:$0xff]
        %v272 = vld [vmem:[%s230 + $0x40] sm:$0xff]
        %v273 = vld [vmem:[%s230 + $0x48] sm:$0xff]
        %v274 = vld [vmem:[%s230 + $0x50] sm:$0xff]
        %v275 = vld [vmem:[%s230 + $0x58] sm:$0xff]
        %v276 = vld [vmem:[%s230 + $0x60] sm:$0xff]
        %v277 = vld [vmem:[%s230 + $0x68] sm:$0xff]
        %v278 = vld [vmem:[%s230 + $0x70] sm:$0xff]
        %v279 = vld [vmem:[%s230 + $0x78] sm:$0xff]
        %p280 = scmp.eq.s32.totalorder %s24, 0
        // Predicated region
        $region45: #{tpu_custom_call.1} parent=39 // pred_check
          %p281 = pneg %p280
        $region46: #{tpu_custom_call.1} parent=39 // pred_check_branch
          %283 = sbr.rel (%p281) target = $region48
        $region47: #{tpu_custom_call.1} parent=39 // pred_region
          %vm284 = vcmask 7168
          %285 = vst.msk [vmem:[#allocation2] sm:$0xff] %vm284, 0.0
          %286 = vst.msk [vmem:[#allocation2 + $0x8] sm:$0xff] %vm284, 0.0
          %287 = vst.msk [vmem:[#allocation2 + $0x10] sm:$0xff] %vm284, 0.0
          %288 = vst.msk [vmem:[#allocation2 + $0x18] sm:$0xff] %vm284, 0.0
          %289 = vst.msk [vmem:[#allocation2 + $0x20] sm:$0xff] %vm284, 0.0
          %290 = vst.msk [vmem:[#allocation2 + $0x28] sm:$0xff] %vm284, 0.0
          %291 = vst.msk [vmem:[#allocation2 + $0x30] sm:$0xff] %vm284, 0.0
          %292 = vst.msk [vmem:[#allocation2 + $0x38] sm:$0xff] %vm284, 0.0
          %293 = vst.msk [vmem:[#allocation3] sm:$0xff] %vm284, -inf
          %294 = vst.msk [vmem:[#allocation3 + $0x8] sm:$0xff] %vm284, -inf
          %295 = vst.msk [vmem:[#allocation3 + $0x10] sm:$0xff] %vm284, -inf
          %296 = vst.msk [vmem:[#allocation3 + $0x18] sm:$0xff] %vm284, -inf
          %297 = vst.msk [vmem:[#allocation3 + $0x20] sm:$0xff] %vm284, -inf
          %298 = vst.msk [vmem:[#allocation3 + $0x28] sm:$0xff] %vm284, -inf
          %299 = vst.msk [vmem:[#allocation3 + $0x30] sm:$0xff] %vm284, -inf
          %300 = vst.msk [vmem:[#allocation3 + $0x38] sm:$0xff] %vm284, -inf
        $region48: #{tpu_custom_call.1} parent=39 // pred_fallthru
          _
        %v301 = vld [vmem:[#allocation2] sm:$0xff]
        %v302 = vld [vmem:[#allocation2 + $0x8] sm:$0xff]
        %v303 = vld [vmem:[#allocation2 + $0x10] sm:$0xff]
        %v304 = vld [vmem:[#allocation2 + $0x18] sm:$0xff]
        %v305 = vld [vmem:[#allocation2 + $0x20] sm:$0xff]
        %v306 = vld [vmem:[#allocation2 + $0x28] sm:$0xff]
        %v307 = vld [vmem:[#allocation2 + $0x30] sm:$0xff]
        %v308 = vld [vmem:[#allocation2 + $0x38] sm:$0xff]
        %v309 = vadd.f32 %v264, %v265
        %310 = vadd.xlane.f32.xlu0 %v309
        %v311 = vpop.xlane.xlu0 %310
        %v312 = vadd.f32 %v266, %v267
        %313 = vadd.xlane.f32.xlu0 %v312
        %v314 = vpop.xlane.xlu0 %313
        %v315 = vadd.f32 %v268, %v269
        %316 = vadd.xlane.f32.xlu0 %v315
        %v317 = vpop.xlane.xlu0 %316
        %v318 = vadd.f32 %v270, %v271
        %319 = vadd.xlane.f32.xlu0 %v318
        %v320 = vpop.xlane.xlu0 %319
        %v321 = vadd.f32 %v272, %v273
        %322 = vadd.xlane.f32.xlu0 %v321
        %v323 = vpop.xlane.xlu0 %322
        %v324 = vadd.f32 %v274, %v275
        %325 = vadd.xlane.f32.xlu0 %v324
        %v326 = vpop.xlane.xlu0 %325
        %v327 = vadd.f32 %v276, %v277
        %328 = vadd.xlane.f32.xlu0 %v327
        %v329 = vpop.xlane.xlu0 %328
        %v330 = vadd.f32 %v278, %v279
        %331 = vadd.xlane.f32.xlu0 %v330
        %v332 = vpop.xlane.xlu0 %331
        %v333 = vadd.f32 %v301, %v311
        %v334 = vadd.f32 %v302, %v314
        %v335 = vadd.f32 %v303, %v317
        %v336 = vadd.f32 %v304, %v320
        %v337 = vadd.f32 %v305, %v323
        %v338 = vadd.f32 %v306, %v326
        %v339 = vadd.f32 %v307, %v329
        %v340 = vadd.f32 %v308, %v332
        %vm341 = vcmask 7168
        %342 = vst.msk [vmem:[#allocation2] sm:$0xff] %vm341, %v333
        %343 = vst.msk [vmem:[#allocation2 + $0x8] sm:$0xff] %vm341, %v334
        %344 = vst.msk [vmem:[#allocation2 + $0x10] sm:$0xff] %vm341, %v335
        %345 = vst.msk [vmem:[#allocation2 + $0x18] sm:$0xff] %vm341, %v336
        %346 = vst.msk [vmem:[#allocation2 + $0x20] sm:$0xff] %vm341, %v337
        %347 = vst.msk [vmem:[#allocation2 + $0x28] sm:$0xff] %vm341, %v338
        %348 = vst.msk [vmem:[#allocation2 + $0x30] sm:$0xff] %vm341, %v339
        %349 = vst.msk [vmem:[#allocation2 + $0x38] sm:$0xff] %vm341, %v340
        %v350 = vld [vmem:[#allocation3] sm:$0xff]
        %v351 = vld [vmem:[#allocation3 + $0x8] sm:$0xff]
        %v352 = vld [vmem:[#allocation3 + $0x10] sm:$0xff]
        %v353 = vld [vmem:[#allocation3 + $0x18] sm:$0xff]
        %v354 = vld [vmem:[#allocation3 + $0x20] sm:$0xff]
        %v355 = vld [vmem:[#allocation3 + $0x28] sm:$0xff]
        %v356 = vld [vmem:[#allocation3 + $0x30] sm:$0xff]
        %v357 = vld [vmem:[#allocation3 + $0x38] sm:$0xff]
        %v358 = vmax.f32 %v264, %v265
        %359 = vmax.xlane.f32.xlu0 %v358
        %v360 = vpop.xlane.xlu0 %359
        %v361 = vmax.f32 %v266, %v267
        %362 = vmax.xlane.f32.xlu0 %v361
        %v363 = vpop.xlane.xlu0 %362
        %v364 = vmax.f32 %v268, %v269
        %365 = vmax.xlane.f32.xlu0 %v364
        %v366 = vpop.xlane.xlu0 %365
        %v367 = vmax.f32 %v270, %v271
        %368 = vmax.xlane.f32.xlu0 %v367
        %v369 = vpop.xlane.xlu0 %368
        %v370 = vmax.f32 %v272, %v273
        %371 = vmax.xlane.f32.xlu0 %v370
        %v372 = vpop.xlane.xlu0 %371
        %v373 = vmax.f32 %v274, %v275
        %374 = vmax.xlane.f32.xlu0 %v373
        %v375 = vpop.xlane.xlu0 %374
        %v376 = vmax.f32 %v276, %v277
        %377 = vmax.xlane.f32.xlu0 %v376
        %v378 = vpop.xlane.xlu0 %377
        %v379 = vmax.f32 %v278, %v279
        %380 = vmax.xlane.f32.xlu0 %v379
        %v381 = vpop.xlane.xlu0 %380
        %v382 = vmax.f32 %v350, %v360
        %v383 = vmax.f32 %v351, %v363
        %v384 = vmax.f32 %v352, %v366
        %v385 = vmax.f32 %v353, %v369
        %v386 = vmax.f32 %v354, %v372
        %v387 = vmax.f32 %v355, %v375
        %v388 = vmax.f32 %v356, %v378
        %v389 = vmax.f32 %v357, %v381
        %390 = vst.msk [vmem:[#allocation3] sm:$0xff] %vm341, %v382
        %391 = vst.msk [vmem:[#allocation3 + $0x8] sm:$0xff] %vm341, %v383
        %392 = vst.msk [vmem:[#allocation3 + $0x10] sm:$0xff] %vm341, %v384
        %393 = vst.msk [vmem:[#allocation3 + $0x18] sm:$0xff] %vm341, %v385
        %394 = vst.msk [vmem:[#allocation3 + $0x20] sm:$0xff] %vm341, %v386
        %395 = vst.msk [vmem:[#allocation3 + $0x28] sm:$0xff] %vm341, %v387
        %396 = vst.msk [vmem:[#allocation3 + $0x30] sm:$0xff] %vm341, %v388
        %397 = vst.msk [vmem:[#allocation3 + $0x38] sm:$0xff] %vm341, %v389
        // Predicated region
        $region49: #{tpu_custom_call.1} parent=39 // pred_check
          %p398 = pneg %p280
        $region50: #{tpu_custom_call.1} parent=39 // pred_check_branch
          %400 = sbr.rel (%p398) target = $region52
        $region51: #{tpu_custom_call.1} parent=39 // pred_region
          %v401 = vld [vmem:[%s1] sm:$0xf]
          %v402 = vld [vmem:[%s2] sm:$0xf]
          %v403 = vld [vmem:[%s3] sm:$0xff]
          %v404 = vld [vmem:[%s3 + $0x8] sm:$0xff]
          %v405 = vld [vmem:[%s3 + $0x10] sm:$0xff]
          %v406 = vld [vmem:[%s3 + $0x18] sm:$0xff]
          %v407 = vld [vmem:[%s3 + $0x20] sm:$0xff]
          %v408 = vld [vmem:[%s3 + $0x28] sm:$0xff]
          %v409 = vld [vmem:[%s3 + $0x30] sm:$0xff]
          %v410 = vld [vmem:[%s3 + $0x38] sm:$0xff]
          %v411 = vld [vmem:[%s4] sm:$0xff]
          %v412 = vld [vmem:[%s4 + $0x8] sm:$0xff]
          %v413 = vld [vmem:[%s4 + $0x10] sm:$0xff]
          %v414 = vld [vmem:[%s4 + $0x18] sm:$0xff]
          %v415 = vld [vmem:[%s4 + $0x20] sm:$0xff]
          %v416 = vld [vmem:[%s4 + $0x28] sm:$0xff]
          %v417 = vld [vmem:[%s4 + $0x30] sm:$0xff]
          %v418 = vld [vmem:[%s4 + $0x38] sm:$0xff]
          %v419 = vld [vmem:[#allocation2] sm:$0xff]
          %v420 = vld [vmem:[#allocation2 + $0x8] sm:$0xff]
          %v421 = vld [vmem:[#allocation2 + $0x10] sm:$0xff]
          %v422 = vld [vmem:[#allocation2 + $0x18] sm:$0xff]
          %v423 = vld [vmem:[#allocation2 + $0x20] sm:$0xff]
          %v424 = vld [vmem:[#allocation2 + $0x28] sm:$0xff]
          %v425 = vld [vmem:[#allocation2 + $0x30] sm:$0xff]
          %v426 = vld [vmem:[#allocation2 + $0x38] sm:$0xff]
          %v427 = vmul.f32 %v419, 0.00390625
          %v428 = vmul.f32 %v420, 0.00390625
          %v429 = vmul.f32 %v421, 0.00390625
          %v430 = vmul.f32 %v422, 0.00390625
          %v431 = vmul.f32 %v423, 0.00390625
          %v432 = vmul.f32 %v424, 0.00390625
          %v433 = vmul.f32 %v425, 0.00390625
          %v434 = vmul.f32 %v426, 0.00390625
          %vm435 = vcmask 523264
          %v437 = vsel %vm435, %v401, 0
          %439 = vmatpush.msra.mxu0 0.0
          %440 = vmatpush.msra.mxu0 0.0
          %441 = vmatpush.msra.mxu0 0.0
          %442 = vmatpush.msra.mxu0 0.0
          %443 = vmatpush.msra.mxu0 0.0
          %444 = vmatpush.msra.mxu0 0.0
          %445 = vmatpush.msra.mxu0 0.0
          %446 = vmatpush.msra.mxu0 0.0
          %447 = vmatpush.msra.mxu0 %v434
          %448 = vmatpush.msra.mxu0 %v433
          %449 = vmatpush.msra.mxu0 %v432
          %450 = vmatpush.msra.mxu0 %v431
          %451 = vmatpush.msra.mxu0 %v430
          %452 = vmatpush.msra.mxu0 %v429
          %453 = vmatpush.msra.mxu0 %v428
          %454 = vmatpush.msra.mxu0 %v427
          %455 = vmatmul.f32.gmra.mxu0 %v437
          %v456 = vpop.f32.mrf.mxu0
          %v457 = vadd.f32 %v402, %v456
          %458 = vdwg.mxu0
          %v459 = vmax.f32 %v457, 0.0
          %vm460 = vcmask 31744
          %v462 = vsel %vm460, %v403, 0
          %v465 = vsel %vm460, %v404, 0
          %v468 = vsel %vm460, %v405, 0
          %v471 = vsel %vm460, %v406, 0
          %v474 = vsel %vm460, %v407, 0
          %v477 = vsel %vm460, %v408, 0
          %v480 = vsel %vm460, %v409, 0
          %v483 = vsel %vm460, %v410, 0
          %vm485 = vcmask 1043456
          %v487 = vsel %vm485, %v459, 0
          %489 = vmatpush.msra.mxu0 0.0
          %490 = vmatpush.msra.mxu0 0.0
          %491 = vmatpush.msra.mxu0 0.0
          %492 = vmatpush.msra.mxu0 0.0
          %493 = vmatpush.msra.mxu0 0.0
          %494 = vmatpush.msra.mxu0 0.0
          %495 = vmatpush.msra.mxu0 0.0
          %496 = vmatpush.msra.mxu0 0.0
          %497 = vmatpush.msra.mxu0 0.0
          %498 = vmatpush.msra.mxu0 0.0
          %499 = vmatpush.msra.mxu0 0.0
          %500 = vmatpush.msra.mxu0 0.0
          %501 = vmatpush.msra.mxu0 0.0
          %502 = vmatpush.msra.mxu0 0.0
          %503 = vmatpush.msra.mxu0 0.0
          %504 = vmatpush.msra.mxu0 %v487
          %505 = vmatmul.f32.gmra.mxu0 %v462
          %v506 = vpop.f32.mrf.mxu0
          %v507 = vadd.f32 %v411, %v506
          %508 = vmatmul.f32.gmra.mxu0 %v465
          %v509 = vpop.f32.mrf.mxu0
          %v510 = vadd.f32 %v412, %v509
          %511 = vmatmul.f32.gmra.mxu0 %v468
          %v512 = vpop.f32.mrf.mxu0
          %v513 = vadd.f32 %v413, %v512
          %514 = vmatmul.f32.gmra.mxu0 %v471
          %v515 = vpop.f32.mrf.mxu0
          %v516 = vadd.f32 %v414, %v515
          %517 = vmatmul.f32.gmra.mxu0 %v474
          %v518 = vpop.f32.mrf.mxu0
          %v519 = vadd.f32 %v415, %v518
          %520 = vmatmul.f32.gmra.mxu0 %v477
          %v521 = vpop.f32.mrf.mxu0
          %v522 = vadd.f32 %v416, %v521
          %523 = vmatmul.f32.gmra.mxu0 %v480
          %v524 = vpop.f32.mrf.mxu0
          %v525 = vadd.f32 %v417, %v524
          %526 = vmatmul.f32.gmra.mxu0 %v483
          %v527 = vpop.f32.mrf.mxu0
          %v528 = vadd.f32 %v418, %v527
          %529 = vdwg.mxu0
          %v530 = vld [vmem:[#allocation3] sm:$0xff]
          %v531 = vld [vmem:[#allocation3 + $0x8] sm:$0xff]
          %v532 = vld [vmem:[#allocation3 + $0x10] sm:$0xff]
          %v533 = vld [vmem:[#allocation3 + $0x18] sm:$0xff]
          %v534 = vld [vmem:[#allocation3 + $0x20] sm:$0xff]
          %v535 = vld [vmem:[#allocation3 + $0x28] sm:$0xff]
          %v536 = vld [vmem:[#allocation3 + $0x30] sm:$0xff]
          %v537 = vld [vmem:[#allocation3 + $0x38] sm:$0xff]
          %538 = vmatpush.msra.mxu0 0.0
          %539 = vmatpush.msra.mxu0 0.0
          %540 = vmatpush.msra.mxu0 0.0
          %541 = vmatpush.msra.mxu0 0.0
          %542 = vmatpush.msra.mxu0 0.0
          %543 = vmatpush.msra.mxu0 0.0
          %544 = vmatpush.msra.mxu0 0.0
          %545 = vmatpush.msra.mxu0 0.0
          %546 = vmatpush.msra.mxu0 %v537
          %547 = vmatpush.msra.mxu0 %v536
          %548 = vmatpush.msra.mxu0 %v535
          %549 = vmatpush.msra.mxu0 %v534
          %550 = vmatpush.msra.mxu0 %v533
          %551 = vmatpush.msra.mxu0 %v532
          %552 = vmatpush.msra.mxu0 %v531
          %553 = vmatpush.msra.mxu0 %v530
          %554 = vmatmul.f32.gmra.mxu0 %v437
          %v555 = vpop.f32.mrf.mxu0
          %v556 = vadd.f32 %v402, %v555
          %557 = vdwg.mxu0
          %v558 = vmax.f32 %v556, 0.0
          %v560 = vsel %vm485, %v558, 0
          %562 = vmatpush.msra.mxu0 0.0
          %563 = vmatpush.msra.mxu0 0.0
          %564 = vmatpush.msra.mxu0 0.0
          %565 = vmatpush.msra.mxu0 0.0
          %566 = vmatpush.msra.mxu0 0.0
          %567 = vmatpush.msra.mxu0 0.0
          %568 = vmatpush.msra.mxu0 0.0
          %569 = vmatpush.msra.mxu0 0.0
          %570 = vmatpush.msra.mxu0 0.0
          %571 = vmatpush.msra.mxu0 0.0
          %572 = vmatpush.msra.mxu0 0.0
          %573 = vmatpush.msra.mxu0 0.0
          %574 = vmatpush.msra.mxu0 0.0
          %575 = vmatpush.msra.mxu0 0.0
          %576 = vmatpush.msra.mxu0 0.0
          %577 = vmatpush.msra.mxu0 %v560
          %578 = vmatmul.f32.gmra.mxu0 %v462
          %v579 = vpop.f32.mrf.mxu0
          %v580 = vadd.f32 %v411, %v579
          %581 = vmatmul.f32.gmra.mxu0 %v465
          %v582 = vpop.f32.mrf.mxu0
          %v583 = vadd.f32 %v412, %v582
          %584 = vmatmul.f32.gmra.mxu0 %v468
          %v585 = vpop.f32.mrf.mxu0
          %v586 = vadd.f32 %v413, %v585
          %587 = vmatmul.f32.gmra.mxu0 %v471
          %v588 = vpop.f32.mrf.mxu0
          %v589 = vadd.f32 %v414, %v588
          %590 = vmatmul.f32.gmra.mxu0 %v474
          %v591 = vpop.f32.mrf.mxu0
          %v592 = vadd.f32 %v415, %v591
          %593 = vmatmul.f32.gmra.mxu0 %v477
          %v594 = vpop.f32.mrf.mxu0
          %v595 = vadd.f32 %v416, %v594
          %596 = vmatmul.f32.gmra.mxu0 %v480
          %v597 = vpop.f32.mrf.mxu0
          %v598 = vadd.f32 %v417, %v597
          %599 = vmatmul.f32.gmra.mxu0 %v483
          %v600 = vpop.f32.mrf.mxu0
          %v601 = vadd.f32 %v418, %v600
          %602 = vdwg.mxu0
          %v603 = vadd.f32 %v507, %v580
          %v604 = vadd.f32 %v510, %v583
          %v605 = vadd.f32 %v513, %v586
          %v606 = vadd.f32 %v516, %v589
          %v607 = vadd.f32 %v519, %v592
          %v608 = vadd.f32 %v522, %v595
          %v609 = vadd.f32 %v525, %v598
          %v610 = vadd.f32 %v528, %v601
          %v611 = vxor.u32 %v603, 2147483648
          %v612 = vxor.u32 %v604, 2147483648
          %v613 = vxor.u32 %v605, 2147483648
          %v614 = vxor.u32 %v606, 2147483648
          %v615 = vxor.u32 %v607, 2147483648
          %v616 = vxor.u32 %v608, 2147483648
          %v617 = vxor.u32 %v609, 2147483648
          %v618 = vxor.u32 %v610, 2147483648
          %v619 = vmul.f32 %v611, 1.442695
          %v620 = vpow.pop %v619
          %v621 = vmul.f32 %v612, 1.442695
          %v622 = vpow.pop %v621
          %v623 = vmul.f32 %v613, 1.442695
          %v624 = vpow.pop %v623
          %v625 = vmul.f32 %v614, 1.442695
          %v626 = vpow.pop %v625
          %v627 = vmul.f32 %v615, 1.442695
          %v628 = vpow.pop %v627
          %v629 = vmul.f32 %v616, 1.442695
          %v630 = vpow.pop %v629
          %v631 = vmul.f32 %v617, 1.442695
          %v632 = vpow.pop %v631
          %v633 = vmul.f32 %v618, 1.442695
          %v634 = vpow.pop %v633
          %v635 = vadd.f32 %v620, 1.0
          %v636 = vadd.f32 %v622, 1.0
          %v637 = vadd.f32 %v624, 1.0
          %v638 = vadd.f32 %v626, 1.0
          %v639 = vadd.f32 %v628, 1.0
          %v640 = vadd.f32 %v630, 1.0
          %v641 = vadd.f32 %v632, 1.0
          %v642 = vadd.f32 %v634, 1.0
          %v643 = vrcp.pop %v635
          %v644 = vmul.f32 %v635, %v643
          %v645 = vsub.f32 1.0, %v644
          %v646 = vmul.f32 %v643, %v645
          %v647 = vadd.f32 %v643, %v646
          %vm648 = vweird.f32 %v635
          %vm649 = vweird.f32 %v643
          %vm650 = vmor %vm648, %vm649
          %v651 = vsel %vm650, %v643, %v647
          %v652 = vand.u32 2147483647, %v635
          %vm653 = vcmp.eq.f32.partialorder %v652, 8.507059e+37
          %v654 = vand.u32 %v635, 2147483648
          %v655 = vor.u32 1.1754944e-38, %v654
          %v656 = vsel %vm653, %v655, %v651
          %v657 = vmul.f32 1.0, %v656
          %v658 = vrcp.pop %v636
          %v659 = vmul.f32 %v636, %v658
          %v660 = vsub.f32 1.0, %v659
          %v661 = vmul.f32 %v658, %v660
          %v662 = vadd.f32 %v658, %v661
          %vm663 = vweird.f32 %v636
          %vm664 = vweird.f32 %v658
          %vm665 = vmor %vm663, %vm664
          %v666 = vsel %vm665, %v658, %v662
          %v667 = vand.u32 2147483647, %v636
          %vm668 = vcmp.eq.f32.partialorder %v667, 8.507059e+37
          %v669 = vand.u32 %v636, 2147483648
          %v670 = vor.u32 1.1754944e-38, %v669
          %v671 = vsel %vm668, %v670, %v666
          %v672 = vmul.f32 1.0, %v671
          %v673 = vrcp.pop %v637
          %v674 = vmul.f32 %v637, %v673
          %v675 = vsub.f32 1.0, %v674
          %v676 = vmul.f32 %v673, %v675
          %v677 = vadd.f32 %v673, %v676
          %vm678 = vweird.f32 %v637
          %vm679 = vweird.f32 %v673
          %vm680 = vmor %vm678, %vm679
          %v681 = vsel %vm680, %v673, %v677
          %v682 = vand.u32 2147483647, %v637
          %vm683 = vcmp.eq.f32.partialorder %v682, 8.507059e+37
          %v684 = vand.u32 %v637, 2147483648
          %v685 = vor.u32 1.1754944e-38, %v684
          %v686 = vsel %vm683, %v685, %v681
          %v687 = vmul.f32 1.0, %v686
          %v688 = vrcp.pop %v638
          %v689 = vmul.f32 %v638, %v688
          %v690 = vsub.f32 1.0, %v689
          %v691 = vmul.f32 %v688, %v690
          %v692 = vadd.f32 %v688, %v691
          %vm693 = vweird.f32 %v638
          %vm694 = vweird.f32 %v688
          %vm695 = vmor %vm693, %vm694
          %v696 = vsel %vm695, %v688, %v692
          %v697 = vand.u32 2147483647, %v638
          %vm698 = vcmp.eq.f32.partialorder %v697, 8.507059e+37
          %v699 = vand.u32 %v638, 2147483648
          %v700 = vor.u32 1.1754944e-38, %v699
          %v701 = vsel %vm698, %v700, %v696
          %v702 = vmul.f32 1.0, %v701
          %v703 = vrcp.pop %v639
          %v704 = vmul.f32 %v639, %v703
          %v705 = vsub.f32 1.0, %v704
          %v706 = vmul.f32 %v703, %v705
          %v707 = vadd.f32 %v703, %v706
          %vm708 = vweird.f32 %v639
          %vm709 = vweird.f32 %v703
          %vm710 = vmor %vm708, %vm709
          %v711 = vsel %vm710, %v703, %v707
          %v712 = vand.u32 2147483647, %v639
          %vm713 = vcmp.eq.f32.partialorder %v712, 8.507059e+37
          %v714 = vand.u32 %v639, 2147483648
          %v715 = vor.u32 1.1754944e-38, %v714
          %v716 = vsel %vm713, %v715, %v711
          %v717 = vmul.f32 1.0, %v716
          %v718 = vrcp.pop %v640
          %v719 = vmul.f32 %v640, %v718
          %v720 = vsub.f32 1.0, %v719
          %v721 = vmul.f32 %v718, %v720
          %v722 = vadd.f32 %v718, %v721
          %vm723 = vweird.f32 %v640
          %vm724 = vweird.f32 %v718
          %vm725 = vmor %vm723, %vm724
          %v726 = vsel %vm725, %v718, %v722
          %v727 = vand.u32 2147483647, %v640
          %vm728 = vcmp.eq.f32.partialorder %v727, 8.507059e+37
          %v729 = vand.u32 %v640, 2147483648
          %v730 = vor.u32 1.1754944e-38, %v729
          %v731 = vsel %vm728, %v730, %v726
          %v732 = vmul.f32 1.0, %v731
          %v733 = vrcp.pop %v641
          %v734 = vmul.f32 %v641, %v733
          %v735 = vsub.f32 1.0, %v734
          %v736 = vmul.f32 %v733, %v735
          %v737 = vadd.f32 %v733, %v736
          %vm738 = vweird.f32 %v641
          %vm739 = vweird.f32 %v733
          %vm740 = vmor %vm738, %vm739
          %v741 = vsel %vm740, %v733, %v737
          %v742 = vand.u32 2147483647, %v641
          %vm743 = vcmp.eq.f32.partialorder %v742, 8.507059e+37
          %v744 = vand.u32 %v641, 2147483648
          %v745 = vor.u32 1.1754944e-38, %v744
          %v746 = vsel %vm743, %v745, %v741
          %v747 = vmul.f32 1.0, %v746
          %v748 = vrcp.pop %v642
          %v749 = vmul.f32 %v642, %v748
          %v750 = vsub.f32 1.0, %v749
          %v751 = vmul.f32 %v748, %v750
          %v752 = vadd.f32 %v748, %v751
          %vm753 = vweird.f32 %v642
          %vm754 = vweird.f32 %v748
          %vm755 = vmor %vm753, %vm754
          %v756 = vsel %vm755, %v748, %v752
          %v757 = vand.u32 2147483647, %v642
          %vm758 = vcmp.eq.f32.partialorder %v757, 8.507059e+37
          %v759 = vand.u32 %v642, 2147483648
          %v760 = vor.u32 1.1754944e-38, %v759
          %v761 = vsel %vm758, %v760, %v756
          %v762 = vmul.f32 1.0, %v761
          %763 = vst.msk [vmem:[%s263] sm:$0xff] %vm341, %v657
          %764 = vst.msk [vmem:[%s263 + $0x8] sm:$0xff] %vm341, %v672
          %765 = vst.msk [vmem:[%s263 + $0x10] sm:$0xff] %vm341, %v687
          %766 = vst.msk [vmem:[%s263 + $0x18] sm:$0xff] %vm341, %v702
          %767 = vst.msk [vmem:[%s263 + $0x20] sm:$0xff] %vm341, %v717
          %768 = vst.msk [vmem:[%s263 + $0x28] sm:$0xff] %vm341, %v732
          %769 = vst.msk [vmem:[%s263 + $0x30] sm:$0xff] %vm341, %v747
          %770 = vst.msk [vmem:[%s263 + $0x38] sm:$0xff] %vm341, %v762
        $region52: #{tpu_custom_call.1} parent=39 // pred_fallthru
          _
        %p771 = scmp.lt.s32.totalorder %s23, 1
        %s772 = scalar_select %p771, %s23, 1
        %s773 = smul.addr %s772, 8
        %s774 = smul.addr %s773, 8
        %s775 = scalar_lea.vmem %s5, %s774
        // Predicated region
        $region53: #{tpu_custom_call.1} parent=39 // pred_check
          %p776 = pneg %p161
        $region54: #{tpu_custom_call.1} parent=39 // pred_check_branch
          %778 = sbr.rel (%p776) target = $region56
        $region55: #{tpu_custom_call.1} parent=39 // pred_region
          _
        $region56: #{tpu_custom_call.1} parent=39 // pred_fallthru
          _
      $region40: #{tpu_custom_call.1} parent=5 // pred_fallthru
        _
      %p779 = scmp.le.s32.totalorder 2, %s14
      // Predicated region
      $region57: #{tpu_custom_call.1} parent=5 // pred_check
        %p780 = pneg %p779
      $region58: #{tpu_custom_call.1} parent=5 // pred_check_branch
        %782 = sbr.rel (%p780) target = $region60
      $region59: #{tpu_custom_call.1} parent=5 // pred_region
        %s783 = ssub.s32 %s14, 2
        // Predicated region
        $region61: #{tpu_custom_call.1} parent=59 // pred_check
          %p784 = pneg %p167
        $region62: #{tpu_custom_call.1} parent=59 // pred_check_branch
          %786 = sbr.rel (%p784) target = $region64
        $region63: #{tpu_custom_call.1} parent=59 // pred_region
          %p787 = scmp.lt.s32.totalorder %s25, 1
          %s788 = scalar_select %p787, %s25, 1
          %s789 = smul.addr %s788, 8
          %s790 = smul.addr %s789, 8
          %s791 = scalar_lea.vmem %s5, %s790
        $region64: #{tpu_custom_call.1} parent=59 // pred_fallthru
          _
      $region60: #{tpu_custom_call.1} parent=5 // pred_fallthru
        _
    $region6: #{tpu_custom_call.1} parent=1 // loop_footer
      %s18 = sadd.s32 1, %s14
    $region7: #{tpu_custom_call.1} parent=1 // loop_footer_branch
      %13 = sbr.rel target = $region3
    $region8: #{tpu_custom_call.1} parent=1 // loop_exit
      _
    %792 = vsyncpa [#allocation5], 1
    %s793 = scalar_lea.sflag [#allocation5], 1
    %794 = vsyncpa %s793, 1

</llo_original>
